<compile_context>
chip_gen: v6e
topology: v6e:2x2x1
jax: 0.10.0
libtpu: 0.0.40
codegen_flags: <defaults>
</compile_context>

<pallas_src>
import functools

import jax
import jax.numpy as jnp
from jax.experimental import pallas as pl
from jax.experimental.pallas import tpu as pltpu

LANE = 128
SUBLANE = 8


def _round_up(x, m):
    return (x + m - 1) // m * m


def dqn_kernel(x_ref, w1_ref, b1_ref, w2_ref, b2_ref, o_ref):
    # fc1: (TB, S) @ (S, H) on the MXU, f32 accumulation.
    h = jnp.dot(x_ref[...], w1_ref[...], preferred_element_type=jnp.float32)
    # bias + ReLU in f32 on the VPU (cheap, off the MXU critical path).
    h = jnp.maximum(h + b1_ref[...], 0.0)
    # fc2: cast once to the weight dtype (bf16) for the second MXU pass.
    out = jnp.dot(h.astype(w2_ref.dtype), w2_ref[...],
                  preferred_element_type=jnp.float32)
    o_ref[...] = (out + b2_ref[...]).astype(o_ref.dtype)


@functools.partial(jax.jit, static_argnames=("block_b", "out_dtype"))
def dqn_forward(x, w1, b1, w2, b2, *, block_b=512, out_dtype=jnp.float32):
    """x: (B, state_dim); w1: (state_dim, hidden); b1: (hidden,) or (1, hidden);
       w2: (hidden, action); b2: (action,) or (1, action). Returns (B, action)
       in `out_dtype` (Q-values kept in f32 by default)."""
    B, S = x.shape
    S_w, H = w1.shape
    H_w, A = w2.shape
    assert S == S_w and H == H_w

    # Matmul operands in the weight dtype (bf16); biases in f32 for the
    # accumulator-side add.
    x = x.astype(w1.dtype)
    b1 = b1.reshape(1, H).astype(jnp.float32)
    b2 = b2.reshape(1, A).astype(jnp.float32)

    # Pad the action dim to a lane multiple -> unmasked stores, legal blocks.
    A_pad = _round_up(A, LANE)
    if A_pad != A:
        w2 = jnp.pad(w2, ((0, 0), (0, A_pad - A)))
        b2 = jnp.pad(b2, ((0, 0), (0, A_pad - A)))

    # Tile the batch; pad B so every tile is full (padded rows are zeros and
    # get sliced off at the end).
    tb = min(block_b, _round_up(B, SUBLANE))
    B_pad = _round_up(B, tb)
    if B_pad != B:
        x = jnp.pad(x, ((0, B_pad - B), (0, 0)))
    grid = (pl.cdiv(B_pad, tb),)

    itemsize = lambda a: a.size * jnp.dtype(a.dtype).itemsize
    cost = pl.CostEstimate(
        flops=2 * B_pad * (S * H + H * A_pad),
        transcendentals=0,
        bytes_accessed=(itemsize(x) + itemsize(w1) + itemsize(b1)
                        + itemsize(w2) + itemsize(b2)
                        + B_pad * A_pad * jnp.dtype(out_dtype).itemsize),
    )

    out = pl.pallas_call(
        dqn_kernel,
        out_shape=jax.ShapeDtypeStruct((B_pad, A_pad), out_dtype),
        grid=grid,
        in_specs=[
            pl.BlockSpec((tb, S), lambda i: (i, 0)),       # x: batch-tiled
            pl.BlockSpec((S, H), lambda i: (0, 0)),        # w1: VMEM-resident
            pl.BlockSpec((1, H), lambda i: (0, 0)),        # b1
            pl.BlockSpec((H, A_pad), lambda i: (0, 0)),    # w2
            pl.BlockSpec((1, A_pad), lambda i: (0, 0)),    # b2
        ],
        out_specs=pl.BlockSpec((tb, A_pad), lambda i: (i, 0)),
        compiler_params=pltpu.CompilerParams(
            dimension_semantics=("parallel",)),            # shard batch on v7x's 2 TCs
        cost_estimate=cost,
    )(x, w1, b1, w2, b2)

    return out[:B, :A]


def init_dqn_params(key, state_dim, action_dim, hidden_dim=256,
                    weight_dtype=jnp.bfloat16):
    """Matches nn.Linear default init: U(-1/sqrt(fan_in), 1/sqrt(fan_in)).
    Weights stored transposed vs PyTorch ([in, out]); weights in bf16 for the
    MXU, biases in f32 (added on the f32 accumulator)."""
    k1, k2, k3, k4 = jax.random.split(key, 4)
    bound1 = 1.0 / (state_dim ** 0.5)
    bound2 = 1.0 / (hidden_dim ** 0.5)
    w1 = jax.random.uniform(k1, (state_dim, hidden_dim), jnp.float32,
                            -bound1, bound1).astype(weight_dtype)
    b1 = jax.random.uniform(k2, (hidden_dim,), jnp.float32, -bound1, bound1)
    w2 = jax.random.uniform(k3, (hidden_dim, action_dim), jnp.float32,
                            -bound2, bound2).astype(weight_dtype)
    b2 = jax.random.uniform(k4, (action_dim,), jnp.float32, -bound2, bound2)
    return w1, b1, w2, b2


if __name__ == "__main__":
    # Small shapes consistent with the module (hidden_dim uses the module
    # default of 256, which is already a lane multiple).
    batch, state_dim, hidden_dim, action_dim = 8, 16, 256, 8

    key = jax.random.PRNGKey(0)
    kx, kp = jax.random.split(key)
    x = jax.random.normal(kx, (batch, state_dim), jnp.float32)
    w1, b1, w2, b2 = init_dqn_params(kp, state_dim, action_dim, hidden_dim)

    out = dqn_forward(x, w1, b1, w2, b2)
    jax.block_until_ready(out)

    # Reference in plain JAX using the same bf16-operand / f32-accumulate math.
    xb = x.astype(w1.dtype)
    h_ref = jnp.maximum(
        jnp.dot(xb, w1, preferred_element_type=jnp.float32) + b1[None, :], 0.0)
    ref = jnp.dot(h_ref.astype(w2.dtype), w2,
                  preferred_element_type=jnp.float32) + b2[None, :]

    assert out.shape == (batch, action_dim)
    assert jnp.allclose(out, ref, atol=2e-2, rtol=2e-2), (
        f"max abs err {jnp.max(jnp.abs(out - ref))}")

    print("KERNEL_OK")
</pallas_src>

<mosaic_0001>
module attributes {stable_mosaic.version = 11 : i64} {
  func.func @dqn_kernel(%arg0: i32, %arg1: memref<8x16xbf16, #tpu.memory_space<vmem>>, %arg2: memref<16x256xbf16, #tpu.memory_space<vmem>>, %arg3: memref<1x256xf32, #tpu.memory_space<vmem>>, %arg4: memref<256x128xbf16, #tpu.memory_space<vmem>>, %arg5: memref<1x128xf32, #tpu.memory_space<vmem>>, %arg6: memref<8x128xf32, #tpu.memory_space<vmem>>) attributes {dimension_semantics = [#tpu.dimension_semantics<parallel>], iteration_bounds = array<i64: 1>, scalar_prefetch = 0 : i64, scratch_operands = 0 : i64, tpu.core_type = #tpu.core_type<tc>, window_params = [{transform_indices = @transform_0, window_bounds = array<i64: 8, 16>}, {pipeline_mode = #tpu.pipeline_mode<synchronous>, transform_indices = @transform_1, window_bounds = array<i64: 16, 256>}, {pipeline_mode = #tpu.pipeline_mode<synchronous>, transform_indices = @transform_2, window_bounds = array<i64: 1, 256>}, {pipeline_mode = #tpu.pipeline_mode<synchronous>, transform_indices = @transform_3, window_bounds = array<i64: 256, 128>}, {pipeline_mode = #tpu.pipeline_mode<synchronous>, transform_indices = @transform_4, window_bounds = array<i64: 1, 128>}, {transform_indices = @transform_5, window_bounds = array<i64: 8, 128>}]} {
    %c0 = arith.constant 0 : index
    %c0_0 = arith.constant 0 : index
    %0 = vector.load %arg1[%c0, %c0_0] : memref<8x16xbf16, #tpu.memory_space<vmem>>, vector<8x16xbf16>
    %c0_1 = arith.constant 0 : index
    %c0_2 = arith.constant 0 : index
    %1 = vector.load %arg2[%c0_1, %c0_2] : memref<16x256xbf16, #tpu.memory_space<vmem>>, vector<16x256xbf16>
    %cst = arith.constant dense<0.000000e+00> : vector<8x256xf32>
    %2 = tpu.matmul %0, %1, %cst {dimension_numbers = #tpu.dot_dimension_numbers<[1], [0], [0], [1], [0, 0, 1, 1], [], []>} : vector<8x16xbf16>, vector<16x256xbf16>, vector<8x256xf32> -> vector<8x256xf32>
    %c0_3 = arith.constant 0 : index
    %c0_4 = arith.constant 0 : index
    %3 = vector.load %arg3[%c0_3, %c0_4] : memref<1x256xf32, #tpu.memory_space<vmem>>, vector<1x256xf32>
    %4 = vector.broadcast %3 : vector<1x256xf32> to vector<8x256xf32>
    %5 = arith.addf %2, %4 : vector<8x256xf32>
    %cst_5 = arith.constant 0.000000e+00 : f32
    %6 = vector.broadcast %cst_5 : f32 to vector<8x256xf32>
    %7 = arith.maximumf %5, %6 : vector<8x256xf32>
    %8 = arith.truncf %7 : vector<8x256xf32> to vector<8x256xbf16>
    %c0_6 = arith.constant 0 : index
    %c0_7 = arith.constant 0 : index
    %9 = vector.load %arg4[%c0_6, %c0_7] : memref<256x128xbf16, #tpu.memory_space<vmem>>, vector<256x128xbf16>
    %cst_8 = arith.constant dense<0.000000e+00> : vector<8x128xf32>
    %10 = tpu.matmul %8, %9, %cst_8 {dimension_numbers = #tpu.dot_dimension_numbers<[1], [0], [0], [1], [0, 0, 1, 1], [], []>} : vector<8x256xbf16>, vector<256x128xbf16>, vector<8x128xf32> -> vector<8x128xf32>
    %c0_9 = arith.constant 0 : index
    %c0_10 = arith.constant 0 : index
    %11 = vector.load %arg5[%c0_9, %c0_10] : memref<1x128xf32, #tpu.memory_space<vmem>>, vector<1x128xf32>
    %12 = vector.broadcast %11 : vector<1x128xf32> to vector<8x128xf32>
    %13 = arith.addf %10, %12 : vector<8x128xf32>
    %c0_11 = arith.constant 0 : index
    %c0_12 = arith.constant 0 : index
    %14 = vector.load %arg6[%c0_11, %c0_12] : memref<8x128xf32, #tpu.memory_space<vmem>>, vector<8x128xf32>
    tpu.vector_store %arg6[%c0_11, %c0_12], %13 {strides = array<i32>} : memref<8x128xf32, #tpu.memory_space<vmem>>, vector<8x128xf32>,
    return
  }
  func.func @transform_0(%arg0: i32) -> (i32, i32) {
    %c0_i32 = arith.constant 0 : i32
    %c0_i32_0 = arith.constant 0 : i32
    return %arg0, %c0_i32 : i32, i32
  }
  func.func @transform_1(%arg0: i32) -> (i32, i32) {
    %c0_i32 = arith.constant 0 : i32
    %c0_i32_0 = arith.constant 0 : i32
    %c0_i32_1 = arith.constant 0 : i32
    return %c0_i32, %c0_i32_0 : i32, i32
  }
  func.func @transform_2(%arg0: i32) -> (i32, i32) {
    %c0_i32 = arith.constant 0 : i32
    %c0_i32_0 = arith.constant 0 : i32
    %c0_i32_1 = arith.constant 0 : i32
    return %c0_i32, %c0_i32_0 : i32, i32
  }
  func.func @transform_3(%arg0: i32) -> (i32, i32) {
    %c0_i32 = arith.constant 0 : i32
    %c0_i32_0 = arith.constant 0 : i32
    %c0_i32_1 = arith.constant 0 : i32
    return %c0_i32, %c0_i32_0 : i32, i32
  }
  func.func @transform_4(%arg0: i32) -> (i32, i32) {
    %c0_i32 = arith.constant 0 : i32
    %c0_i32_0 = arith.constant 0 : i32
    %c0_i32_1 = arith.constant 0 : i32
    return %c0_i32, %c0_i32_0 : i32, i32
  }
  func.func @transform_5(%arg0: i32) -> (i32, i32) {
    %c0_i32 = arith.constant 0 : i32
    %c0_i32_0 = arith.constant 0 : i32
    return %arg0, %c0_i32 : i32, i32
  }
}

</mosaic_0001>

<llo_original>
// kernel: dqn_forward.1
$region0: #{dqn_forward.1}
  #allocation0 [shape = 'u32[]', space=smem, size = 0x4, offset = 0x4, fixed_abs, tag = 'smem constant byte address 0x4 - core index']
  #allocation1 [shape = 'u32[144,128]{1,0:T(1,128)}', space=vmem, size = 0x12000, scoped, tag = 'internal scratch']
  %s0 = inlined_call_operand.vmem [shape: bf16[8,16], index: 0, kind: input, shape index: {}]
  %s1 = inlined_call_operand.vmem [shape: bf16[16,256], index: 1, kind: input, shape index: {}]
  %s2 = inlined_call_operand.vmem [shape: f32[1,256], index: 2, kind: input, shape index: {}]
  %s3 = inlined_call_operand.vmem [shape: bf16[256,128], index: 3, kind: input, shape index: {}]
  %s4 = inlined_call_operand.vmem [shape: f32[1,128], index: 4, kind: input, shape index: {}]
  %s5 = inlined_call_operand.hbm [shape: f32[8,128], index: 5, kind: output, shape index: {}]
  %s6 = sld [smem:[#allocation0]]
  $region30: #{dqn_forward.1} parent=0
    _
  %s8 = ssub.s32 1, %s6
  %s9 = scalar_select 0, %s8, %s6
  $region1: #{dqn_forward.1} parent=0
    #allocation2 [shape = 'u8[4096]{0}', space=vmem, size = 0x1000, scoped, tag = 'output window, operand 0, single buffered']
    #allocation3 [shape = 's32[1]{0}', space=sflag, size = 0x4, scoped, tag = 'scoped memory for dqn_forward.1']
    %10 = vsyncpa [#allocation3], 0
    // Predicated region
    $region2: #{dqn_forward.1} parent=1 // pred_check
      _
    $region3: #{dqn_forward.1} parent=1 // pred_check_branch
      %12 = sbr.rel (0) target = $region5
    $region4: #{dqn_forward.1} parent=1 // pred_region
      _
    $region5: #{dqn_forward.1} parent=1 // pred_fallthru
      _
    // Predicated region
    $region6: #{dqn_forward.1} parent=1 // pred_check
      _
    $region7: #{dqn_forward.1} parent=1 // pred_check_branch
      %14 = sbr.rel (0) target = $region9
    $region8: #{dqn_forward.1} parent=1 // pred_region
      _
    $region9: #{dqn_forward.1} parent=1 // pred_fallthru
      _
    // Predicated region
    $region10: #{dqn_forward.1} parent=1 // pred_check
      _
    $region11: #{dqn_forward.1} parent=1 // pred_check_branch
      %16 = sbr.rel (0) target = $region13
    $region12: #{dqn_forward.1} parent=1 // pred_region
      _
    $region13: #{dqn_forward.1} parent=1 // pred_fallthru
      _
    // Predicated region
    $region14: #{dqn_forward.1} parent=1 // pred_check
      _
    $region15: #{dqn_forward.1} parent=1 // pred_check_branch
      %18 = sbr.rel (0) target = $region17
    $region16: #{dqn_forward.1} parent=1 // pred_region
      _
    $region17: #{dqn_forward.1} parent=1 // pred_fallthru
      _
    // Predicated region
    $region18: #{dqn_forward.1} parent=1 // pred_check
      _
    $region19: #{dqn_forward.1} parent=1 // pred_check_branch
      %20 = sbr.rel (0) target = $region21
    $region20: #{dqn_forward.1} parent=1 // pred_region
      _
    $region21: #{dqn_forward.1} parent=1 // pred_fallthru
      _
    %v22 = vld [vmem:[%s0] sm:$0xf]
    %v23 = vld [vmem:[%s1] sm:$0xff]
    %v24 = vld [vmem:[%s1 + $0x8] sm:$0xff]
    %v25 = vld [vmem:[%s2] sm:$0x3]
    %v27 = vlaneseq
    %v28 = vshrl.u32 %v27, 7
    %v29 = vsub.s32 0, %v28
    %v30 = vrot.slane %v25, %v29
    %v31 = vlaneseq
    %v32 = vshrl.u32 %v31, 7
    %v33 = vsub.s32 1, %v32
    %v34 = vrot.slane %v25, %v33
    %v39 = vunpack.c.l.b16 %v23
    %v40 = vunpack.c.h.b16 %v23
    %v41 = vunpack.c.l.b16 %v24
    %v42 = vunpack.c.h.b16 %v24
    %v43 = vpack.c.b16 %v41, %v39
    %v44 = vpack.c.b16 %v42, %v40
    %vm47 = vcmask 130048
    %v49 = vsel %vm47, %v22, 0
    %51 = vmatprep.subr.bf16.mxu0 0
    %52 = vmatpush1.bf16.msra.mxu0 0
    %53 = vmatprep.subr.bf16.mxu0 0
    %54 = vmatpush1.bf16.msra.mxu0 0
    %55 = vmatprep.subr.bf16.mxu0 0
    %56 = vmatpush1.bf16.msra.mxu0 0
    %57 = vmatprep.subr.bf16.mxu0 0
    %58 = vmatpush1.bf16.msra.mxu0 0
    %59 = vmatprep.subr.bf16.mxu0 0
    %60 = vmatpush1.bf16.msra.mxu0 0
    %61 = vmatprep.subr.bf16.mxu0 0
    %62 = vmatpush1.bf16.msra.mxu0 0
    %63 = vmatprep.subr.bf16.mxu0 0
    %64 = vmatpush1.bf16.msra.mxu0 0
    %65 = vmatprep.subr.bf16.mxu0 %v44
    %66 = vmatpush1.bf16.msra.mxu0 %v43
    %67 = vmatprep.subr.bf16.mxu0 0
    %68 = vmatpush2.bf16.msra.mxu0 0
    %69 = vmatprep.subr.bf16.mxu0 0
    %70 = vmatpush2.bf16.msra.mxu0 0
    %71 = vmatprep.subr.bf16.mxu0 0
    %72 = vmatpush2.bf16.msra.mxu0 0
    %73 = vmatprep.subr.bf16.mxu0 0
    %74 = vmatpush2.bf16.msra.mxu0 0
    %75 = vmatprep.subr.bf16.mxu0 0
    %76 = vmatpush2.bf16.msra.mxu0 0
    %77 = vmatprep.subr.bf16.mxu0 0
    %78 = vmatpush2.bf16.msra.mxu0 0
    %79 = vmatprep.subr.bf16.mxu0 0
    %80 = vmatpush2.bf16.msra.mxu0 0
    %81 = vmatprep.subr.bf16.mxu0 0
    %82 = vmatpush2.bf16.msra.mxu0 0
    %83 = vmatprep.mubr.bf16.mxu0 0
    %84 = vmatmul.mubr.bf16.gmra.mxu0 %v49
    %v85 = vpop.f32.mrf.mxu0
    %v86 = vadd.f32 %v30, %v85
    %v87 = vpop.f32.mrf.mxu0
    %v88 = vadd.f32 %v34, %v87
    %v89 = vpop.f32.mrf.mxu0
    %v90 = vpop.f32.mrf.mxu0
    %91 = vdwg.mxu0
    %v92 = vmax.f32 %v86, 0.0
    %v93 = vmax.f32 %v88, 0.0
    %v94 = vpack.c.bf16 %v92, %v92
    %v95 = vpack.c.bf16 %v93, %v93
    %v96 = vld [vmem:[%s3] sm:$0xf]
    %v97 = vld [vmem:[%s3 + $0x4] sm:$0xf]
    %v98 = vld [vmem:[%s3 + $0x8] sm:$0xf]
    %v99 = vld [vmem:[%s3 + $0xc] sm:$0xf]
    %v100 = vld [vmem:[%s3 + $0x10] sm:$0xf]
    %v101 = vld [vmem:[%s3 + $0x14] sm:$0xf]
    %v102 = vld [vmem:[%s3 + $0x18] sm:$0xf]
    %v103 = vld [vmem:[%s3 + $0x1c] sm:$0xf]
    %v104 = vld [vmem:[%s3 + $0x20] sm:$0xf]
    %v105 = vld [vmem:[%s3 + $0x24] sm:$0xf]
    %v106 = vld [vmem:[%s3 + $0x28] sm:$0xf]
    %v107 = vld [vmem:[%s3 + $0x2c] sm:$0xf]
    %v108 = vld [vmem:[%s3 + $0x30] sm:$0xf]
    %v109 = vld [vmem:[%s3 + $0x34] sm:$0xf]
    %v110 = vld [vmem:[%s3 + $0x38] sm:$0xf]
    %v111 = vld [vmem:[%s3 + $0x3c] sm:$0xf]
    %v112 = vld [vmem:[%s3 + $0x40] sm:$0xf]
    %v113 = vld [vmem:[%s3 + $0x44] sm:$0xf]
    %v114 = vld [vmem:[%s3 + $0x48] sm:$0xf]
    %v115 = vld [vmem:[%s3 + $0x4c] sm:$0xf]
    %v116 = vld [vmem:[%s3 + $0x50] sm:$0xf]
    %v117 = vld [vmem:[%s3 + $0x54] sm:$0xf]
    %v118 = vld [vmem:[%s3 + $0x58] sm:$0xf]
    %v119 = vld [vmem:[%s3 + $0x5c] sm:$0xf]
    %v120 = vld [vmem:[%s3 + $0x60] sm:$0xf]
    %v121 = vld [vmem:[%s3 + $0x64] sm:$0xf]
    %v122 = vld [vmem:[%s3 + $0x68] sm:$0xf]
    %v123 = vld [vmem:[%s3 + $0x6c] sm:$0xf]
    %v124 = vld [vmem:[%s3 + $0x70] sm:$0xf]
    %v125 = vld [vmem:[%s3 + $0x74] sm:$0xf]
    %v126 = vld [vmem:[%s3 + $0x78] sm:$0xf]
    %v127 = vld [vmem:[%s3 + $0x7c] sm:$0xf]
    %v128 = vld [vmem:[%s4] sm:$0x1]
    %v130 = vlaneseq
    %v131 = vshrl.u32 %v130, 7
    %v132 = vsub.s32 0, %v131
    %v133 = vrot.slane %v128, %v132
    %v167 = vunpack.c.l.b16 %v96
    %v168 = vunpack.c.l.b16 %v97
    %v169 = vunpack.c.l.b16 %v98
    %v170 = vunpack.c.l.b16 %v99
    %v171 = vunpack.c.l.b16 %v100
    %v172 = vunpack.c.l.b16 %v101
    %v173 = vunpack.c.l.b16 %v102
    %v174 = vunpack.c.l.b16 %v103
    %v175 = vunpack.c.l.b16 %v104
    %v176 = vunpack.c.l.b16 %v105
    %v177 = vunpack.c.l.b16 %v106
    %v178 = vunpack.c.l.b16 %v107
    %v179 = vunpack.c.l.b16 %v108
    %v180 = vunpack.c.l.b16 %v109
    %v181 = vunpack.c.l.b16 %v110
    %v182 = vunpack.c.l.b16 %v111
    %v183 = vunpack.c.l.b16 %v112
    %v184 = vunpack.c.l.b16 %v113
    %v185 = vunpack.c.l.b16 %v114
    %v186 = vunpack.c.l.b16 %v115
    %v187 = vunpack.c.l.b16 %v116
    %v188 = vunpack.c.l.b16 %v117
    %v189 = vunpack.c.l.b16 %v118
    %v190 = vunpack.c.l.b16 %v119
    %v191 = vunpack.c.l.b16 %v120
    %v192 = vunpack.c.l.b16 %v121
    %v193 = vunpack.c.l.b16 %v122
    %v194 = vunpack.c.l.b16 %v123
    %v195 = vunpack.c.l.b16 %v124
    %v196 = vunpack.c.l.b16 %v125
    %v197 = vunpack.c.l.b16 %v126
    %v198 = vunpack.c.l.b16 %v127
    %v199 = vpack.c.b16 %v168, %v167
    %v200 = vpack.c.b16 %v170, %v169
    %v201 = vpack.c.b16 %v172, %v171
    %v202 = vpack.c.b16 %v174, %v173
    %v203 = vpack.c.b16 %v176, %v175
    %v204 = vpack.c.b16 %v178, %v177
    %v205 = vpack.c.b16 %v180, %v179
    %v206 = vpack.c.b16 %v182, %v181
    %v207 = vpack.c.b16 %v184, %v183
    %v208 = vpack.c.b16 %v186, %v185
    %v209 = vpack.c.b16 %v188, %v187
    %v210 = vpack.c.b16 %v190, %v189
    %v211 = vpack.c.b16 %v192, %v191
    %v212 = vpack.c.b16 %v194, %v193
    %v213 = vpack.c.b16 %v196, %v195
    %v214 = vpack.c.b16 %v198, %v197
    %231 = vmatprep.subr.bf16.mxu0 0
    %232 = vmatpush1.bf16.msra.mxu0 %v206
    %233 = vmatprep.subr.bf16.mxu0 0
    %234 = vmatpush1.bf16.msra.mxu0 %v205
    %235 = vmatprep.subr.bf16.mxu0 0
    %236 = vmatpush1.bf16.msra.mxu0 %v204
    %237 = vmatprep.subr.bf16.mxu0 0
    %238 = vmatpush1.bf16.msra.mxu0 %v203
    %239 = vmatprep.subr.bf16.mxu0 0
    %240 = vmatpush1.bf16.msra.mxu0 %v202
    %241 = vmatprep.subr.bf16.mxu0 0
    %242 = vmatpush1.bf16.msra.mxu0 %v201
    %243 = vmatprep.subr.bf16.mxu0 0
    %244 = vmatpush1.bf16.msra.mxu0 %v200
    %245 = vmatprep.subr.bf16.mxu0 0
    %246 = vmatpush1.bf16.msra.mxu0 %v199
    %247 = vmatprep.subr.bf16.mxu0 0
    %248 = vmatpush2.bf16.msra.mxu0 %v214
    %249 = vmatprep.subr.bf16.mxu0 0
    %250 = vmatpush2.bf16.msra.mxu0 %v213
    %251 = vmatprep.subr.bf16.mxu0 0
    %252 = vmatpush2.bf16.msra.mxu0 %v212
    %253 = vmatprep.subr.bf16.mxu0 0
    %254 = vmatpush2.bf16.msra.mxu0 %v211
    %255 = vmatprep.subr.bf16.mxu0 0
    %256 = vmatpush2.bf16.msra.mxu0 %v210
    %257 = vmatprep.subr.bf16.mxu0 0
    %258 = vmatpush2.bf16.msra.mxu0 %v209
    %259 = vmatprep.subr.bf16.mxu0 0
    %260 = vmatpush2.bf16.msra.mxu0 %v208
    %261 = vmatprep.subr.bf16.mxu0 0
    %262 = vmatpush2.bf16.msra.mxu0 %v207
    %263 = vmatprep.mubr.bf16.mxu0 %v95
    %264 = vmatmul.mubr.bf16.gmra.mxu0 %v94
    %v265 = vpop.f32.mrf.mxu0
    %v266 = vadd.f32 %v133, %v265
    %v267 = vpop.f32.mrf.mxu0
    %v268 = vpop.f32.mrf.mxu0
    %v269 = vpop.f32.mrf.mxu0
    %270 = vdwg.mxu0
    %271 = vst [vmem:[#allocation2] sm:$0xff] %v266
    // Predicated region
    $region22: #{dqn_forward.1} parent=1 // pred_check
      _
    $region23: #{dqn_forward.1} parent=1 // pred_check_branch
      %273 = sbr.rel (0) target = $region25
    $region24: #{dqn_forward.1} parent=1 // pred_region
      %s275 = ssub.s32 128, 128
      %276 = vsyncadd [#allocation3], %s275
      %s278 = sshll.u32 [#allocation2], 4
      %s279 = int_to_ptr.vmem [resolvable:$true] %s278
      %281 = dma.vmem_to_hbm [thread:$0]  %s279, 128, %s5, [#allocation3]
    $region25: #{dqn_forward.1} parent=1 // pred_fallthru
      _
    // Predicated region
    $region26: #{dqn_forward.1} parent=1 // pred_check
      _
    $region27: #{dqn_forward.1} parent=1 // pred_check_branch
      %283 = sbr.rel (0) target = $region29
    $region28: #{dqn_forward.1} parent=1 // pred_region
      %284 = dma.done [#allocation3], 128
    $region29: #{dqn_forward.1} parent=1 // pred_fallthru
      _
    %285 = vsyncpa [#allocation3], 1

</llo_original>
